<compile_context>
chip_gen: v7x
topology: tpu7x:2x2x1
jax: 0.10.0
libtpu: 0.0.40
codegen_flags: <defaults>
</compile_context>

<pallas_src>
import jax
import jax.numpy as jnp
from jax.experimental import pallas as pl
from jax.experimental.pallas import tpu as pltpu


def _round_up(x, m):
    return (x + m - 1) // m * m


def _pad2d(x, rows, cols):
    r, c = x.shape
    if r == rows and c == cols:
        return x
    return jnp.pad(x, ((0, rows - r), (0, cols - c)))


def generator_kernel(z_ref, w1_ref, b1_ref, w2_ref, b2_ref, out_ref):
    # MXU matmul #1, f32 accumulation; bias add on the VPU and tanh on the EUP,
    # both in f32 (right split on v5e which has no bf16 VPU/EUP).
    h = jnp.dot(z_ref[...], w1_ref[...], preferred_element_type=jnp.float32)
    h = jnp.tanh(h + b1_ref[...])
    # MXU matmul #2: cast the activation to match the weight dtype (bf16 when
    # compute_dtype=bf16 on v6e/v7x), accumulate in f32, add the bias in f32.
    x = jnp.dot(h.astype(w2_ref.dtype), w2_ref[...],
                preferred_element_type=jnp.float32) + b2_ref[...]
    out_ref[...] = x.astype(out_ref.dtype)


def generator_forward(z, w1, b1, w2, b2, *, block_m=512, compute_dtype=None):
    """z: [N, Z_dim] -> [N, D_in].

    w1: [Z_dim, H_enc1], b1: [1, H_enc1], w2: [H_enc1, D_in], b2: [1, D_in]
    compute_dtype: optional dtype for the MXU operands (e.g. jnp.bfloat16 on
    v6e/v7x).  Accumulation, bias adds and tanh stay in float32.
    """
    n, z_dim = z.shape
    h_enc1 = w1.shape[1]
    d_in = w2.shape[1]

    LANE, SUB = 128, 8
    zd_p = _round_up(z_dim, LANE)
    h_p = _round_up(h_enc1, LANE)
    d_p = _round_up(d_in, LANE)

    # Batch tile: as large as the VMEM budget allows, multiple of 8 sublanes.
    tm = min(_round_up(block_m, SUB), _round_up(n, SUB))
    op_itemsize = (4 if compute_dtype is None
                   else jnp.dtype(compute_dtype).itemsize)
    vmem_budget = 40 * 1024 * 1024          # headroom vs. v7x's 64 MiB VMEM

    def _vmem_bytes(tm_):
        io = 2 * (tm_ * zd_p + tm_ * d_p) * op_itemsize      # dbl-buffered z / out
        w = 2 * (zd_p * h_p + h_p * d_p) * op_itemsize + 2 * (h_p + d_p) * 4
        scratch = tm_ * h_p * 4 + tm_ * d_p * 4              # f32 intermediates
        return io + w + scratch

    while tm > SUB and _vmem_bytes(tm) > vmem_budget:
        tm = _round_up(tm // 2, SUB)

    n_p = _round_up(n, tm)

    # Lane-dense zero padding (sliced away on output; zeros cannot perturb the
    # valid columns because padded weight rows/cols are zero).
    zp = _pad2d(z, n_p, zd_p)
    w1p = _pad2d(w1, zd_p, h_p)
    b1p = _pad2d(b1.reshape(1, -1), 1, h_p).astype(jnp.float32)
    w2p = _pad2d(w2, h_p, d_p)
    b2p = _pad2d(b2.reshape(1, -1), 1, d_p).astype(jnp.float32)
    if compute_dtype is not None:
        zp = zp.astype(compute_dtype)
        w1p = w1p.astype(compute_dtype)
        w2p = w2p.astype(compute_dtype)

    out_itemsize = jnp.dtype(z.dtype).itemsize
    cost = pl.CostEstimate(
        flops=2 * n_p * (zd_p * h_p + h_p * d_p),
        transcendentals=n_p * h_p,
        bytes_accessed=(zp.size * zp.dtype.itemsize
                        + w1p.size * w1p.dtype.itemsize
                        + w2p.size * w2p.dtype.itemsize
                        + n_p * d_p * out_itemsize),
    )

    out_p = pl.pallas_call(
        generator_kernel,
        out_shape=jax.ShapeDtypeStruct((n_p, d_p), z.dtype),
        grid=(n_p // tm,),
        in_specs=[
            pl.BlockSpec((tm, zd_p), lambda i: (i, 0)),      # z tile, pipelined
            pl.BlockSpec((zd_p, h_p), lambda i: (0, 0)),     # W1, VMEM-resident
            pl.BlockSpec((1, h_p), lambda i: (0, 0)),        # b1
            pl.BlockSpec((h_p, d_p), lambda i: (0, 0)),      # W2, VMEM-resident
            pl.BlockSpec((1, d_p), lambda i: (0, 0)),        # b2
        ],
        out_specs=pl.BlockSpec((tm, d_p), lambda i: (i, 0)),
        compiler_params=pltpu.CompilerParams(
            dimension_semantics=("parallel",),               # megacore on v7x
            vmem_limit_bytes=48 * 1024 * 1024,
        ),
        cost_estimate=cost,
    )(zp, w1p, b1p, w2p, b2p)

    return out_p[:n, :d_in]


def init_params(key, z_dim, h_enc1, d_in, dtype=jnp.float32):
    """Deterministic synthetic parameter init (uniform like nn.Linear default)."""
    k1, k2, k3, k4 = jax.random.split(key, 4)
    bound1 = 1.0 / (z_dim ** 0.5)
    bound2 = 1.0 / (h_enc1 ** 0.5)
    # stored as [in, out] (transposed vs. PyTorch's [out, in])
    w1 = jax.random.uniform(k1, (z_dim, h_enc1), dtype, -bound1, bound1)
    b1 = jax.random.uniform(k2, (1, h_enc1), dtype, -bound1, bound1)
    w2 = jax.random.uniform(k3, (h_enc1, d_in), dtype, -bound2, bound2)
    b2 = jax.random.uniform(k4, (1, d_in), dtype, -bound2, bound2)
    return w1, b1, w2, b2


if __name__ == "__main__":
    # Small shapes implied by the module: z: [Nbatch, Z_dim] -> x: [Nbatch, D_in].
    # N deliberately not a multiple of the small demo tile to exercise batch
    # padding + output slicing.
    N, Z_DIM, H_ENC1, D_IN = 20, 16, 32, 64

    key = jax.random.PRNGKey(0)
    k_z, k_p = jax.random.split(key)
    z = jax.random.normal(k_z, (N, Z_DIM), jnp.float32)
    w1, b1, w2, b2 = init_params(k_p, Z_DIM, H_ENC1, D_IN)

    # Reference in plain JAX (same math as the PyTorch forward).
    ref = jnp.tanh(z @ w1 + b1) @ w2 + b2

    # 1) Default path: TM clamps to the (padded) batch, single grid step.
    out = jax.block_until_ready(generator_forward(z, w1, b1, w2, b2))
    assert out.shape == (N, D_IN)
    assert jnp.allclose(out, ref, atol=1e-5, rtol=1e-5)

    # 2) Multi-tile pipelined path (grid over batch tiles, padding + slicing).
    #    block_m is tiny here only to exercise the >1-step grid at demo shapes;
    #    real workloads should keep the large default.
    out_tiled = jax.block_until_ready(
        generator_forward(z, w1, b1, w2, b2, block_m=8))
    assert out_tiled.shape == (N, D_IN)
    assert jnp.allclose(out_tiled, ref, atol=1e-5, rtol=1e-5)

    # TODO(synk): the LSTM_mode==1 branch (PytorchSeq2VecWrapper/LSTM) is dead
    # code in the reference module (LSTM_mode is hard-coded to 0) and is not
    # implemented here.

    print("KERNEL_OK")
</pallas_src>

<mosaic_0001>
module attributes {stable_mosaic.version = 11 : i64} {
  func.func @generator_kernel(%arg0: i32, %arg1: memref<24x128xf32, #tpu.memory_space<vmem>>, %arg2: memref<128x128xf32, #tpu.memory_space<vmem>>, %arg3: memref<1x128xf32, #tpu.memory_space<vmem>>, %arg4: memref<128x128xf32, #tpu.memory_space<vmem>>, %arg5: memref<1x128xf32, #tpu.memory_space<vmem>>, %arg6: memref<24x128xf32, #tpu.memory_space<vmem>>) attributes {dimension_semantics = [#tpu.dimension_semantics<parallel>], iteration_bounds = array<i64: 1>, scalar_prefetch = 0 : i64, scratch_operands = 0 : i64, tpu.core_type = #tpu.core_type<tc>, window_params = [{transform_indices = @transform_0, window_bounds = array<i64: 24, 128>}, {pipeline_mode = #tpu.pipeline_mode<synchronous>, transform_indices = @transform_1, window_bounds = array<i64: 128, 128>}, {pipeline_mode = #tpu.pipeline_mode<synchronous>, transform_indices = @transform_2, window_bounds = array<i64: 1, 128>}, {pipeline_mode = #tpu.pipeline_mode<synchronous>, transform_indices = @transform_3, window_bounds = array<i64: 128, 128>}, {pipeline_mode = #tpu.pipeline_mode<synchronous>, transform_indices = @transform_4, window_bounds = array<i64: 1, 128>}, {transform_indices = @transform_5, window_bounds = array<i64: 24, 128>}]} {
    %c0 = arith.constant 0 : index
    %c0_0 = arith.constant 0 : index
    %0 = vector.load %arg1[%c0, %c0_0] : memref<24x128xf32, #tpu.memory_space<vmem>>, vector<24x128xf32>
    %c0_1 = arith.constant 0 : index
    %c0_2 = arith.constant 0 : index
    %1 = vector.load %arg2[%c0_1, %c0_2] : memref<128x128xf32, #tpu.memory_space<vmem>>, vector<128x128xf32>
    %cst = arith.constant dense<0.000000e+00> : vector<24x128xf32>
    %2 = tpu.matmul %0, %1, %cst {dimension_numbers = #tpu.dot_dimension_numbers<[1], [0], [0], [1], [0, 0, 1, 1], [], []>} : vector<24x128xf32>, vector<128x128xf32>, vector<24x128xf32> -> vector<24x128xf32>
    %c0_3 = arith.constant 0 : index
    %c0_4 = arith.constant 0 : index
    %3 = vector.load %arg3[%c0_3, %c0_4] : memref<1x128xf32, #tpu.memory_space<vmem>>, vector<1x128xf32>
    %4 = vector.broadcast %3 : vector<1x128xf32> to vector<24x128xf32>
    %5 = arith.addf %2, %4 : vector<24x128xf32>
    %6 = math.tanh %5 : vector<24x128xf32>
    %c0_5 = arith.constant 0 : index
    %c0_6 = arith.constant 0 : index
    %7 = vector.load %arg4[%c0_5, %c0_6] : memref<128x128xf32, #tpu.memory_space<vmem>>, vector<128x128xf32>
    %cst_7 = arith.constant dense<0.000000e+00> : vector<24x128xf32>
    %8 = tpu.matmul %6, %7, %cst_7 {dimension_numbers = #tpu.dot_dimension_numbers<[1], [0], [0], [1], [0, 0, 1, 1], [], []>} : vector<24x128xf32>, vector<128x128xf32>, vector<24x128xf32> -> vector<24x128xf32>
    %c0_8 = arith.constant 0 : index
    %c0_9 = arith.constant 0 : index
    %9 = vector.load %arg5[%c0_8, %c0_9] : memref<1x128xf32, #tpu.memory_space<vmem>>, vector<1x128xf32>
    %10 = vector.broadcast %9 : vector<1x128xf32> to vector<24x128xf32>
    %11 = arith.addf %8, %10 : vector<24x128xf32>
    %c0_10 = arith.constant 0 : index
    %c0_11 = arith.constant 0 : index
    %12 = vector.load %arg6[%c0_10, %c0_11] : memref<24x128xf32, #tpu.memory_space<vmem>>, vector<24x128xf32>
    tpu.vector_store %arg6[%c0_10, %c0_11], %11 {strides = array<i32>} : memref<24x128xf32, #tpu.memory_space<vmem>>, vector<24x128xf32>,
    return
  }
  func.func @transform_0(%arg0: i32) -> (i32, i32) {
    %c0_i32 = arith.constant 0 : i32
    %c0_i32_0 = arith.constant 0 : i32
    return %arg0, %c0_i32 : i32, i32
  }
  func.func @transform_1(%arg0: i32) -> (i32, i32) {
    %c0_i32 = arith.constant 0 : i32
    %c0_i32_0 = arith.constant 0 : i32
    %c0_i32_1 = arith.constant 0 : i32
    return %c0_i32, %c0_i32_0 : i32, i32
  }
  func.func @transform_2(%arg0: i32) -> (i32, i32) {
    %c0_i32 = arith.constant 0 : i32
    %c0_i32_0 = arith.constant 0 : i32
    %c0_i32_1 = arith.constant 0 : i32
    return %c0_i32, %c0_i32_0 : i32, i32
  }
  func.func @transform_3(%arg0: i32) -> (i32, i32) {
    %c0_i32 = arith.constant 0 : i32
    %c0_i32_0 = arith.constant 0 : i32
    %c0_i32_1 = arith.constant 0 : i32
    return %c0_i32, %c0_i32_0 : i32, i32
  }
  func.func @transform_4(%arg0: i32) -> (i32, i32) {
    %c0_i32 = arith.constant 0 : i32
    %c0_i32_0 = arith.constant 0 : i32
    %c0_i32_1 = arith.constant 0 : i32
    return %c0_i32, %c0_i32_0 : i32, i32
  }
  func.func @transform_5(%arg0: i32) -> (i32, i32) {
    %c0_i32 = arith.constant 0 : i32
    %c0_i32_0 = arith.constant 0 : i32
    return %arg0, %c0_i32 : i32, i32
  }
}

</mosaic_0001>

<llo_original>
// kernel: tpu_custom_call.1
$region0: #{tpu_custom_call.1}
  #allocation0 [shape = 'u32[]', space=smem, size = 0x4, offset = 0x4, fixed_abs, tag = 'smem constant byte address 0x4 - core index']
  #allocation1 [shape = 'u32[144,128]{1,0:T(1,128)}', space=vmem, size = 0x12000, scoped, tag = 'internal scratch']
  %s0 = inlined_call_operand.hbm [shape: f32[24,128], index: 0, kind: input, shape index: {}]
  %s1 = inlined_call_operand.hbm [shape: f32[128,128], index: 1, kind: input, shape index: {}]
  %s2 = inlined_call_operand.vmem [shape: f32[1,128], index: 2, kind: input, shape index: {}]
  %s3 = inlined_call_operand.hbm [shape: f32[128,128], index: 3, kind: input, shape index: {}]
  %s4 = inlined_call_operand.vmem [shape: f32[1,128], index: 4, kind: input, shape index: {}]
  %s5 = inlined_call_operand.hbm [shape: f32[24,128], index: 5, kind: output, shape index: {}]
  %s6 = sld [smem:[#allocation0]]
  $region42: #{tpu_custom_call.1} parent=0
    _
  %s8 = ssub.s32 1, %s6
  %s9 = scalar_select 0, %s8, %s6
  $region1: #{tpu_custom_call.1} parent=0
    #allocation2 [shape = 'u8[12288]{0}', space=vmem, size = 0x3000, scoped, tag = 'input window, operand 0, single buffered']
    #allocation3 [shape = 's32[1]{0}', space=sflag, size = 0x4, scoped, tag = 'scoped memory for tpu_custom_call.1']
    #allocation4 [shape = 's32[1]{0}', space=sflag, size = 0x4, scoped, tag = 'scoped memory for tpu_custom_call.1']
    #allocation5 [shape = 'u8[65536]{0}', space=vmem, size = 0x10000, scoped, tag = 'input window, operand 1, single buffered']
    #allocation6 [shape = 's32[1]{0}', space=sflag, size = 0x4, scoped, tag = 'scoped memory for tpu_custom_call.1']
    #allocation7 [shape = 'u8[65536]{0}', space=vmem, size = 0x10000, scoped, tag = 'input window, operand 3, single buffered']
    #allocation8 [shape = 'u8[12288]{0}', space=vmem, size = 0x3000, scoped, tag = 'output window, operand 0, single buffered']
    %10 = vsyncpa [#allocation3], 0
    %11 = vsyncpa [#allocation6], 0
    %12 = vsyncpa [#allocation4], 0
    // Predicated region
    $region2: #{tpu_custom_call.1} parent=1 // pred_check
      _
    $region3: #{tpu_custom_call.1} parent=1 // pred_check_branch
      %14 = sbr.rel (0) target = $region5
    $region4: #{tpu_custom_call.1} parent=1 // pred_region
      %s16 = ssub.s32 384, 384
      %17 = vsyncadd [#allocation3], %s16
      %s18 = sshll.u32 [#allocation2], 4
      %s19 = int_to_ptr.vmem [resolvable:$true] %s18
      %24 = dma.hbm_to_vmem [thread:$0]  %s0, 384, %s19, [#allocation3], 128, 128, 8
    $region5: #{tpu_custom_call.1} parent=1 // pred_fallthru
      _
    // Predicated region
    $region6: #{tpu_custom_call.1} parent=1 // pred_check
      _
    $region7: #{tpu_custom_call.1} parent=1 // pred_check_branch
      %26 = sbr.rel (0) target = $region9
    $region8: #{tpu_custom_call.1} parent=1 // pred_region
      %s28 = ssub.s32 2048, 2048
      %29 = vsyncadd [#allocation6], %s28
      %s30 = sshll.u32 [#allocation5], 4
      %s31 = int_to_ptr.vmem [resolvable:$true] %s30
      %36 = dma.hbm_to_vmem [thread:$0]  %s1, 2048, %s31, [#allocation6], 128, 128, 8
    $region9: #{tpu_custom_call.1} parent=1 // pred_fallthru
      _
    // Predicated region
    $region10: #{tpu_custom_call.1} parent=1 // pred_check
      _
    $region11: #{tpu_custom_call.1} parent=1 // pred_check_branch
      %38 = sbr.rel (0) target = $region13
    $region12: #{tpu_custom_call.1} parent=1 // pred_region
      _
    $region13: #{tpu_custom_call.1} parent=1 // pred_fallthru
      _
    // Predicated region
    $region14: #{tpu_custom_call.1} parent=1 // pred_check
      _
    $region15: #{tpu_custom_call.1} parent=1 // pred_check_branch
      %40 = sbr.rel (0) target = $region17
    $region16: #{tpu_custom_call.1} parent=1 // pred_region
      %s42 = ssub.s32 2048, 2048
      %43 = vsyncadd [#allocation6], %s42
      %s44 = sshll.u32 [#allocation7], 4
      %s45 = int_to_ptr.vmem [resolvable:$true] %s44
      %50 = dma.hbm_to_vmem [thread:$0]  %s3, 2048, %s45, [#allocation6], 128, 128, 8
    $region17: #{tpu_custom_call.1} parent=1 // pred_fallthru
      _
    // Predicated region
    $region18: #{tpu_custom_call.1} parent=1 // pred_check
      _
    $region19: #{tpu_custom_call.1} parent=1 // pred_check_branch
      %52 = sbr.rel (0) target = $region21
    $region20: #{tpu_custom_call.1} parent=1 // pred_region
      _
    $region21: #{tpu_custom_call.1} parent=1 // pred_fallthru
      _
    // Predicated region
    $region22: #{tpu_custom_call.1} parent=1 // pred_check
      _
    $region23: #{tpu_custom_call.1} parent=1 // pred_check_branch
      %54 = sbr.rel (0) target = $region25
    $region24: #{tpu_custom_call.1} parent=1 // pred_region
      %55 = dma.done [#allocation3], 384
    $region25: #{tpu_custom_call.1} parent=1 // pred_fallthru
      _
    // Predicated region
    $region26: #{tpu_custom_call.1} parent=1 // pred_check
      _
    $region27: #{tpu_custom_call.1} parent=1 // pred_check_branch
      %57 = sbr.rel (0) target = $region29
    $region28: #{tpu_custom_call.1} parent=1 // pred_region
      %58 = dma.done [#allocation6], 2048
    $region29: #{tpu_custom_call.1} parent=1 // pred_fallthru
      _
    // Predicated region
    $region30: #{tpu_custom_call.1} parent=1 // pred_check
      _
    $region31: #{tpu_custom_call.1} parent=1 // pred_check_branch
      %60 = sbr.rel (0) target = $region33
    $region32: #{tpu_custom_call.1} parent=1 // pred_region
      %61 = dma.done [#allocation6], 2048
    $region33: #{tpu_custom_call.1} parent=1 // pred_fallthru
      _
    %v62 = vld [vmem:[#allocation2] sm:$0xff]
    %v63 = vld [vmem:[#allocation2 + $0x8] sm:$0xff]
    %v64 = vld [vmem:[#allocation2 + $0x10] sm:$0xff]
    %v65 = vld [vmem:[#allocation5] sm:$0xff]
    %v66 = vld [vmem:[#allocation5 + $0x8] sm:$0xff]
    %v67 = vld [vmem:[#allocation5 + $0x10] sm:$0xff]
    %v68 = vld [vmem:[#allocation5 + $0x18] sm:$0xff]
    %v69 = vld [vmem:[#allocation5 + $0x20] sm:$0xff]
    %v70 = vld [vmem:[#allocation5 + $0x28] sm:$0xff]
    %v71 = vld [vmem:[#allocation5 + $0x30] sm:$0xff]
    %v72 = vld [vmem:[#allocation5 + $0x38] sm:$0xff]
    %v73 = vld [vmem:[#allocation5 + $0x40] sm:$0xff]
    %v74 = vld [vmem:[#allocation5 + $0x48] sm:$0xff]
    %v75 = vld [vmem:[#allocation5 + $0x50] sm:$0xff]
    %v76 = vld [vmem:[#allocation5 + $0x58] sm:$0xff]
    %v77 = vld [vmem:[#allocation5 + $0x60] sm:$0xff]
    %v78 = vld [vmem:[#allocation5 + $0x68] sm:$0xff]
    %v79 = vld [vmem:[#allocation5 + $0x70] sm:$0xff]
    %v80 = vld [vmem:[#allocation5 + $0x78] sm:$0xff]
    %v81 = vld [vmem:[%s2] sm:$0x1]
    %v83 = vlaneseq
    %v84 = vshrl.u32 %v83, 7
    %v85 = vsub.s32 0, %v84
    %v86 = vrot.slane %v81, %v85
    %88 = vmatprep.subr.mxu0 0.0
    %89 = vmatpush1.msra.mxu0 %v65
    %90 = vmatprep.subr.mxu0 0.0
    %91 = vmatpush1.msra.mxu0 %v66
    %92 = vmatprep.subr.mxu0 0.0
    %93 = vmatpush1.msra.mxu0 %v67
    %94 = vmatprep.subr.mxu0 0.0
    %95 = vmatpush1.msra.mxu0 %v68
    %96 = vmatprep.subr.mxu0 0.0
    %97 = vmatpush1.msra.mxu0 %v69
    %98 = vmatprep.subr.mxu0 0.0
    %99 = vmatpush1.msra.mxu0 %v70
    %100 = vmatprep.subr.mxu0 0.0
    %101 = vmatpush1.msra.mxu0 %v71
    %102 = vmatprep.subr.mxu0 0.0
    %103 = vmatpush1.msra.mxu0 %v72
    %104 = vmatprep.subr.mxu0 0.0
    %105 = vmatpush1.msra.mxu0 %v73
    %106 = vmatprep.subr.mxu0 0.0
    %107 = vmatpush1.msra.mxu0 %v74
    %108 = vmatprep.subr.mxu0 0.0
    %109 = vmatpush1.msra.mxu0 %v75
    %110 = vmatprep.subr.mxu0 0.0
    %111 = vmatpush1.msra.mxu0 %v76
    %112 = vmatprep.subr.mxu0 0.0
    %113 = vmatpush1.msra.mxu0 %v77
    %114 = vmatprep.subr.mxu0 0.0
    %115 = vmatpush1.msra.mxu0 %v78
    %116 = vmatprep.subr.mxu0 0.0
    %117 = vmatpush1.msra.mxu0 %v79
    %118 = vmatprep.subr.mxu0 0.0
    %119 = vmatpush1.msra.mxu0 %v80
    %120 = vmatprep.subr.mxu0 0.0
    %121 = vmatpush1.msra.mxu0 0.0
    %122 = vmatprep.subr.mxu0 0.0
    %123 = vmatpush1.msra.mxu0 0.0
    %124 = vmatprep.subr.mxu0 0.0
    %125 = vmatpush1.msra.mxu0 0.0
    %126 = vmatprep.subr.mxu0 0.0
    %127 = vmatpush1.msra.mxu0 0.0
    %128 = vmatprep.subr.mxu0 0.0
    %129 = vmatpush1.msra.mxu0 0.0
    %130 = vmatprep.subr.mxu0 0.0
    %131 = vmatpush1.msra.mxu0 0.0
    %132 = vmatprep.subr.mxu0 0.0
    %133 = vmatpush1.msra.mxu0 0.0
    %134 = vmatprep.subr.mxu0 0.0
    %135 = vmatpush1.msra.mxu0 0.0
    %136 = vmatprep.subr.mxu0 0.0
    %137 = vmatpush1.msra.mxu0 0.0
    %138 = vmatprep.subr.mxu0 0.0
    %139 = vmatpush1.msra.mxu0 0.0
    %140 = vmatprep.subr.mxu0 0.0
    %141 = vmatpush1.msra.mxu0 0.0
    %142 = vmatprep.subr.mxu0 0.0
    %143 = vmatpush1.msra.mxu0 0.0
    %144 = vmatprep.subr.mxu0 0.0
    %145 = vmatpush1.msra.mxu0 0.0
    %146 = vmatprep.subr.mxu0 0.0
    %147 = vmatpush1.msra.mxu0 0.0
    %148 = vmatprep.subr.mxu0 0.0
    %149 = vmatpush1.msra.mxu0 0.0
    %150 = vmatprep.subr.mxu0 0.0
    %151 = vmatpush1.msra.mxu0 0.0
    %152 = vmatprep.mubr.f32.mxu0 0.0
    %153 = vmatmul.mubr.f32.gmra.mrb[0].mxu0 %v62
    %v154 = vpop.f32.mrb[0].mxu0
    %v155 = vadd.f32 %v86, %v154
    %v156 = vpop.f32.mrb[0].mxu0
    %157 = vmatprep.mubr.f32.mxu0 0.0
    %158 = vmatmul.mubr.f32.gmra.mrb[0].mxu0 %v63
    %v159 = vpop.f32.mrb[0].mxu0
    %v160 = vadd.f32 %v86, %v159
    %v161 = vpop.f32.mrb[0].mxu0
    %162 = vmatprep.mubr.f32.mxu0 0.0
    %163 = vmatmul.mubr.f32.gmra.mrb[0].mxu0 %v64
    %v164 = vpop.f32.mrb[0].mxu0
    %v165 = vadd.f32 %v86, %v164
    %v166 = vpop.f32.mrb[0].mxu0
    %167 = vdwg.mxu0
    %v168 = vtanh.pop %v155
    %v169 = vtanh.pop %v160
    %v170 = vtanh.pop %v165
    %v171 = vld [vmem:[#allocation7] sm:$0xff]
    %v172 = vld [vmem:[#allocation7 + $0x8] sm:$0xff]
    %v173 = vld [vmem:[#allocation7 + $0x10] sm:$0xff]
    %v174 = vld [vmem:[#allocation7 + $0x18] sm:$0xff]
    %v175 = vld [vmem:[#allocation7 + $0x20] sm:$0xff]
    %v176 = vld [vmem:[#allocation7 + $0x28] sm:$0xff]
    %v177 = vld [vmem:[#allocation7 + $0x30] sm:$0xff]
    %v178 = vld [vmem:[#allocation7 + $0x38] sm:$0xff]
    %v179 = vld [vmem:[#allocation7 + $0x40] sm:$0xff]
    %v180 = vld [vmem:[#allocation7 + $0x48] sm:$0xff]
    %v181 = vld [vmem:[#allocation7 + $0x50] sm:$0xff]
    %v182 = vld [vmem:[#allocation7 + $0x58] sm:$0xff]
    %v183 = vld [vmem:[#allocation7 + $0x60] sm:$0xff]
    %v184 = vld [vmem:[#allocation7 + $0x68] sm:$0xff]
    %v185 = vld [vmem:[#allocation7 + $0x70] sm:$0xff]
    %v186 = vld [vmem:[#allocation7 + $0x78] sm:$0xff]
    %v187 = vld [vmem:[%s4] sm:$0x1]
    %v189 = vlaneseq
    %v190 = vshrl.u32 %v189, 7
    %v191 = vsub.s32 0, %v190
    %v192 = vrot.slane %v187, %v191
    %194 = vmatprep.subr.mxu0 0.0
    %195 = vmatpush1.msra.mxu0 %v171
    %196 = vmatprep.subr.mxu0 0.0
    %197 = vmatpush1.msra.mxu0 %v172
    %198 = vmatprep.subr.mxu0 0.0
    %199 = vmatpush1.msra.mxu0 %v173
    %200 = vmatprep.subr.mxu0 0.0
    %201 = vmatpush1.msra.mxu0 %v174
    %202 = vmatprep.subr.mxu0 0.0
    %203 = vmatpush1.msra.mxu0 %v175
    %204 = vmatprep.subr.mxu0 0.0
    %205 = vmatpush1.msra.mxu0 %v176
    %206 = vmatprep.subr.mxu0 0.0
    %207 = vmatpush1.msra.mxu0 %v177
    %208 = vmatprep.subr.mxu0 0.0
    %209 = vmatpush1.msra.mxu0 %v178
    %210 = vmatprep.subr.mxu0 0.0
    %211 = vmatpush1.msra.mxu0 %v179
    %212 = vmatprep.subr.mxu0 0.0
    %213 = vmatpush1.msra.mxu0 %v180
    %214 = vmatprep.subr.mxu0 0.0
    %215 = vmatpush1.msra.mxu0 %v181
    %216 = vmatprep.subr.mxu0 0.0
    %217 = vmatpush1.msra.mxu0 %v182
    %218 = vmatprep.subr.mxu0 0.0
    %219 = vmatpush1.msra.mxu0 %v183
    %220 = vmatprep.subr.mxu0 0.0
    %221 = vmatpush1.msra.mxu0 %v184
    %222 = vmatprep.subr.mxu0 0.0
    %223 = vmatpush1.msra.mxu0 %v185
    %224 = vmatprep.subr.mxu0 0.0
    %225 = vmatpush1.msra.mxu0 %v186
    %226 = vmatprep.subr.mxu0 0.0
    %227 = vmatpush1.msra.mxu0 0.0
    %228 = vmatprep.subr.mxu0 0.0
    %229 = vmatpush1.msra.mxu0 0.0
    %230 = vmatprep.subr.mxu0 0.0
    %231 = vmatpush1.msra.mxu0 0.0
    %232 = vmatprep.subr.mxu0 0.0
    %233 = vmatpush1.msra.mxu0 0.0
    %234 = vmatprep.subr.mxu0 0.0
    %235 = vmatpush1.msra.mxu0 0.0
    %236 = vmatprep.subr.mxu0 0.0
    %237 = vmatpush1.msra.mxu0 0.0
    %238 = vmatprep.subr.mxu0 0.0
    %239 = vmatpush1.msra.mxu0 0.0
    %240 = vmatprep.subr.mxu0 0.0
    %241 = vmatpush1.msra.mxu0 0.0
    %242 = vmatprep.subr.mxu0 0.0
    %243 = vmatpush1.msra.mxu0 0.0
    %244 = vmatprep.subr.mxu0 0.0
    %245 = vmatpush1.msra.mxu0 0.0
    %246 = vmatprep.subr.mxu0 0.0
    %247 = vmatpush1.msra.mxu0 0.0
    %248 = vmatprep.subr.mxu0 0.0
    %249 = vmatpush1.msra.mxu0 0.0
    %250 = vmatprep.subr.mxu0 0.0
    %251 = vmatpush1.msra.mxu0 0.0
    %252 = vmatprep.subr.mxu0 0.0
    %253 = vmatpush1.msra.mxu0 0.0
    %254 = vmatprep.subr.mxu0 0.0
    %255 = vmatpush1.msra.mxu0 0.0
    %256 = vmatprep.subr.mxu0 0.0
    %257 = vmatpush1.msra.mxu0 0.0
    %258 = vmatprep.mubr.f32.mxu0 0.0
    %259 = vmatmul.mubr.f32.gmra.mrb[0].mxu0 %v168
    %v260 = vpop.f32.mrb[0].mxu0
    %v261 = vadd.f32 %v192, %v260
    %v262 = vpop.f32.mrb[0].mxu0
    %263 = vmatprep.mubr.f32.mxu0 0.0
    %264 = vmatmul.mubr.f32.gmra.mrb[0].mxu0 %v169
    %v265 = vpop.f32.mrb[0].mxu0
    %v266 = vadd.f32 %v192, %v265
    %v267 = vpop.f32.mrb[0].mxu0
    %268 = vmatprep.mubr.f32.mxu0 0.0
    %269 = vmatmul.mubr.f32.gmra.mrb[0].mxu0 %v170
    %v270 = vpop.f32.mrb[0].mxu0
    %v271 = vadd.f32 %v192, %v270
    %v272 = vpop.f32.mrb[0].mxu0
    %273 = vdwg.mxu0
    %274 = vst [vmem:[#allocation8] sm:$0xff] %v261
    %275 = vst [vmem:[#allocation8 + $0x8] sm:$0xff] %v266
    %276 = vst [vmem:[#allocation8 + $0x10] sm:$0xff] %v271
    // Predicated region
    $region34: #{tpu_custom_call.1} parent=1 // pred_check
      _
    $region35: #{tpu_custom_call.1} parent=1 // pred_check_branch
      %278 = sbr.rel (0) target = $region37
    $region36: #{tpu_custom_call.1} parent=1 // pred_region
      %s280 = ssub.s32 384, 384
      %281 = vsyncadd [#allocation4], %s280
      %s282 = sshll.u32 [#allocation8], 4
      %s283 = int_to_ptr.vmem [resolvable:$true] %s282
      %288 = dma.vmem_to_hbm [thread:$0]  %s283, 384, %s5, [#allocation4], 128, 128, 8
    $region37: #{tpu_custom_call.1} parent=1 // pred_fallthru
      _
    // Predicated region
    $region38: #{tpu_custom_call.1} parent=1 // pred_check
      _
    $region39: #{tpu_custom_call.1} parent=1 // pred_check_branch
      %290 = sbr.rel (0) target = $region41
    $region40: #{tpu_custom_call.1} parent=1 // pred_region
      %291 = dma.done [#allocation4], 384
    $region41: #{tpu_custom_call.1} parent=1 // pred_fallthru
      _
    %292 = vsyncpa [#allocation3], 1
    %293 = vsyncpa [#allocation6], 1
    %294 = vsyncpa [#allocation4], 1

</llo_original>
